<compile_context>
chip_gen: v7x
topology: tpu7x:2x2x1
jax: 0.10.0
libtpu: 0.0.40
codegen_flags: <defaults>
</compile_context>

<pallas_src>
import functools

import numpy as np
import jax
import jax.numpy as jnp
from jax import lax
from jax.experimental import pallas as pl
from jax.experimental.pallas import tpu as pltpu


_NEG = -1e30      # finite "-inf" for max-pool padding taps (kept in f32)
_PADL = 16        # zero-guard lanes on each side of the flattened conv grid
_C1_SLOT = 16     # sublane slot per conv2 tap in the K-stacked scratch (>= C1, 16-aligned)


# --------------------------- host-side constants ---------------------------- #

def _interp_matrix_1d(in_size, out_size):
    """PyTorch bilinear (align_corners=False) 1-D interpolation matrix (out, in)."""
    scale = in_size / out_size
    d = np.arange(out_size, dtype=np.float64)
    src = np.maximum(scale * (d + 0.5) - 0.5, 0.0)
    x0 = np.minimum(np.floor(src).astype(np.int64), in_size - 1)
    x1 = np.minimum(x0 + 1, in_size - 1)
    w1 = src - x0
    w0 = 1.0 - w1
    M = np.zeros((out_size, in_size), dtype=np.float32)
    M[np.arange(out_size), x0] += w0.astype(np.float32)
    M[np.arange(out_size), x1] += w1.astype(np.float32)
    return M


@functools.lru_cache(maxsize=None)
def _spatial_constants(hc, wc, hp, wp, h_out, w_out):
    """Cached spatial constants for the fused kernel.

    Returns:
      shifts : 9 static lane shifts (one per 3x3 tap) on the flattened (hc*wc) axis
      valid  : (9, 1, hc*wc) f32, 1 where the tap source lies inside the grid
      pbias  : (9, 1, hc*wc) f32, 0 where valid else -1e30 (maxpool -inf padding)
      rt2    : (hc*wc, h_out*w_out) f32 bilinear upsample matrix with the pool's
               stride-2 subsampling folded in (rows at non-even positions are 0)
    """
    hw_c = hc * wc
    shifts = []
    valid = np.zeros((9, 1, hw_c), np.float32)
    for kh in range(3):
        for kw in range(3):
            t = kh * 3 + kw
            shifts.append((kh - 1) * wc + (kw - 1))
            for oy in range(hc):
                iy = oy + kh - 1
                for ox in range(wc):
                    ix = ox + kw - 1
                    if 0 <= iy < hc and 0 <= ix < wc:
                        valid[t, 0, oy * wc + ox] = 1.0
    pbias = (_NEG * (1.0 - valid)).astype(np.float32)

    rt = np.kron(_interp_matrix_1d(hp, h_out),
                 _interp_matrix_1d(wp, w_out)).T.astype(np.float32)   # (hp*wp, HW_out)
    rt2 = np.zeros((hw_c, h_out * w_out), np.float32)
    for py in range(hp):
        for px in range(wp):
            rt2[(2 * py) * wc + 2 * px, :] = rt[py * wp + px, :]
    return tuple(shifts), valid, pbias, rt2


def _im2col_3x3_s2(x, hc, wc):
    """(N, C, H, W) -> (N, 9*C, hc*wc) stride-2/pad-1 3x3 patches; K = ci*9 + kh*3 + kw."""
    n, c, _, _ = x.shape
    xp = jnp.pad(x, ((0, 0), (0, 0), (1, 1), (1, 1)))
    taps = [xp[:, :, kh:kh + 2 * hc:2, kw:kw + 2 * wc:2]
            for kh in range(3) for kw in range(3)]          # each (N, C, hc, wc)
    col = jnp.stack(taps, axis=2)                           # (N, C, 9, hc, wc)
    return col.reshape(n, c * 9, hc * wc)


# ------------------------------ fused kernel -------------------------------- #

def _make_kernel(shifts, c1, c2, hw_c):
    padl = _PADL
    slot = _C1_SLOT

    def kernel(x_ref, wk1_ref, b1_ref, wk2_ref, b2_ref, m_ref, pb_ref, rt2_ref,
               o_ref, ypad_ref, y2pad_ref, taps_ref):
        f32 = jnp.float32

        # ---- conv1 (3x3, s2, p1): im2col done in wrapper -> one MXU matmul ----
        y1 = jnp.dot(wk1_ref[...], x_ref[0], preferred_element_type=f32) + b1_ref[...]

        # Stage y1 into a zero-guarded, lane-padded buffer so every 3x3 tap is a
        # static lane slice (no gather matrices, no gather matmuls).
        ypad_ref[...] = jnp.zeros_like(ypad_ref)
        taps_ref[...] = jnp.zeros_like(taps_ref)
        ypad_ref[:, padl:padl + hw_c] = y1
        yp = ypad_ref[...]

        # ---- conv2 (3x3, s1, p1): 9 masked shifted taps stacked along K, ONE
        #      (C2, 9*slot) @ (9*slot, hw_c) matmul ----
        for t, s in enumerate(shifts):
            tap = yp[:, padl + s:padl + s + hw_c] * m_ref[t]
            taps_ref[t * slot:t * slot + c1, :] = tap.astype(taps_ref.dtype)
        y2 = jnp.dot(wk2_ref[...], taps_ref[...], preferred_element_type=f32) + b2_ref[...]

        # ---- maxpool 3x3 s2 p1: evaluated at every stride-1 position via
        #      shifted slices + (-1e30) pad bias; stride-2 subsample folded into rt2 ----
        y2pad_ref[...] = jnp.zeros_like(y2pad_ref)
        y2pad_ref[:, padl:padl + hw_c] = y2
        y2p = y2pad_ref[...]
        pooled = None
        for t, s in enumerate(shifts):
            tap = y2p[:, padl + s:padl + s + hw_c] + pb_ref[t]
            pooled = tap if pooled is None else jnp.maximum(pooled, tap)

        # ---- bilinear upsample (align_corners=False): one lane-dense matmul ----
        o_ref[0] = jnp.dot(pooled.astype(rt2_ref.dtype), rt2_ref[...],
                           preferred_element_type=f32)

    return kernel


# ------------------------------ JAX wrapper --------------------------------- #

def simple_net_forward(x_nchw, params):
    """Forward pass of simple_net. Input/output are NCHW like PyTorch."""
    w1, b1, w2, b2 = params                        # PyTorch OIHW weights + biases
    n, cin, h_in, w_in = x_nchw.shape
    c1, c2 = w1.shape[0], w2.shape[0]
    hc, wc = (h_in + 1) // 2, (w_in + 1) // 2      # conv1 output (k3, s2, p1)
    hp, wp = (hc + 1) // 2, (wc + 1) // 2          # pool output  (k3, s2, p1)
    hw_c, hw_out = hc * wc, h_in * w_in
    k1 = 9 * cin
    assert wc + 1 <= _PADL and c1 <= _C1_SLOT

    shifts, valid, pbias, rt2 = _spatial_constants(hc, wc, hp, wp, h_in, w_in)

    # conv1 im2col on the XLA side (input is only a few KiB) -> conv1 is one matmul.
    xcol = _im2col_3x3_s2(x_nchw, hc, wc).astype(jnp.bfloat16)        # (N, 9*Cin, hw_c)

    # Weights in bf16 (MXU-native); biases and accumulation stay f32.
    wk1 = w1.reshape(c1, k1).astype(jnp.bfloat16)                     # (C1, 9*Cin)
    w2_taps = jnp.transpose(w2, (2, 3, 0, 1)).reshape(9, c2, c1)      # (tap, Cout, Cin)
    wk2 = jnp.zeros((9, c2, _C1_SLOT), jnp.float32).at[:, :, :c1].set(w2_taps)
    wk2 = jnp.transpose(wk2, (1, 0, 2)).reshape(c2, 9 * _C1_SLOT).astype(jnp.bfloat16)
    b1c = b1.reshape(c1, 1).astype(jnp.float32)
    b2c = b2.reshape(c2, 1).astype(jnp.float32)

    kernel = _make_kernel(shifts, c1, c2, hw_c)

    out_flat = pl.pallas_call(
        kernel,
        out_shape=jax.ShapeDtypeStruct((n, c2, hw_out), jnp.float32),
        grid=(n,),
        in_specs=[
            pl.BlockSpec((1, k1, hw_c), lambda i: (i, 0, 0)),         # im2col(x)
            pl.BlockSpec((c1, k1), lambda i: (0, 0)),                 # conv1 weights
            pl.BlockSpec((c1, 1), lambda i: (0, 0)),                  # conv1 bias
            pl.BlockSpec((c2, 9 * _C1_SLOT), lambda i: (0, 0)),       # conv2 weights (K-stacked)
            pl.BlockSpec((c2, 1), lambda i: (0, 0)),                  # conv2 bias
            pl.BlockSpec((9, 1, hw_c), lambda i: (0, 0, 0)),          # conv2 tap validity mask
            pl.BlockSpec((9, 1, hw_c), lambda i: (0, 0, 0)),          # pool pad bias (f32)
            pl.BlockSpec((hw_c, hw_out), lambda i: (0, 0)),           # upsample (pool folded in)
        ],
        out_specs=pl.BlockSpec((1, c2, hw_out), lambda i: (i, 0, 0)),
        scratch_shapes=[
            pltpu.VMEM((c1, hw_c + 2 * _PADL), jnp.float32),          # zero-guarded y1
            pltpu.VMEM((c2, hw_c + 2 * _PADL), jnp.float32),          # zero-guarded y2
            pltpu.VMEM((9 * _C1_SLOT, hw_c), jnp.bfloat16),           # K-stacked conv2 taps
        ],
        compiler_params=pltpu.CompilerParams(
            dimension_semantics=("parallel",)),
    )(xcol, wk1, b1c, wk2, b2c,
      jnp.asarray(valid), jnp.asarray(pbias),
      jnp.asarray(rt2, dtype=jnp.bfloat16))

    return out_flat.reshape(n, c2, h_in, w_in)


# --------------------------- reference (plain XLA) --------------------------- #

def _reference_forward(x_nchw, params):
    """Pure-XLA reference: conv_general_dilated / reduce_window / interp matmul."""
    w1, b1, w2, b2 = params
    n, _, h_in, w_in = x_nchw.shape
    dn = ('NCHW', 'OIHW', 'NCHW')
    y = lax.conv_general_dilated(x_nchw, w1, (2, 2), ((1, 1), (1, 1)),
                                 dimension_numbers=dn) + b1.reshape(1, -1, 1, 1)
    y = lax.conv_general_dilated(y, w2, (1, 1), ((1, 1), (1, 1)),
                                 dimension_numbers=dn) + b2.reshape(1, -1, 1, 1)
    y = lax.reduce_window(y, -jnp.inf, lax.max, (1, 1, 3, 3), (1, 1, 2, 2),
                          ((0, 0), (0, 0), (1, 1), (1, 1)))
    _, c2, hp, wp = y.shape
    r = jnp.asarray(np.kron(_interp_matrix_1d(hp, h_in),
                            _interp_matrix_1d(wp, w_in)))            # (HW_out, HW_p)
    out = jnp.einsum('ncq,oq->nco', y.reshape(n, c2, hp * wp), r)
    return out.reshape(n, c2, h_in, w_in)


def init_params(key):
    """Deterministic synthetic parameters (shapes from simple_net.__init__)."""
    k1, k2, k3, k4 = jax.random.split(key, 4)
    w1 = jax.random.normal(k1, (10, 3, 3, 3), jnp.float32) * 0.1     # OIHW
    b1 = jax.random.normal(k2, (10,), jnp.float32) * 0.1
    w2 = jax.random.normal(k3, (20, 10, 3, 3), jnp.float32) * 0.05   # OIHW
    b2 = jax.random.normal(k4, (20,), jnp.float32) * 0.05
    return w1, b1, w2, b2


if __name__ == "__main__":
    key = jax.random.PRNGKey(0)
    pkey, xkey = jax.random.split(key)
    params = init_params(pkey)
    x = jax.random.normal(xkey, (2, 3, 16, 16), jnp.float32)   # NCHW, like PyTorch

    out = jax.block_until_ready(jax.jit(simple_net_forward)(x, params))
    assert out.shape == (2, 20, 16, 16), out.shape
    assert bool(jnp.all(jnp.isfinite(out)))

    ref = _reference_forward(x, params)
    err = float(jnp.max(jnp.abs(out - ref)))
    assert err < 5e-2, f"max abs error vs XLA reference: {err}"

    print("KERNEL_OK")
</pallas_src>

<mosaic_0001>
module attributes {stable_mosaic.version = 11 : i64} {
  func.func @kernel(%arg0: i32, %arg1: memref<1x27x64xbf16, #tpu.memory_space<vmem>>, %arg2: memref<10x27xbf16, #tpu.memory_space<vmem>>, %arg3: memref<10x1xf32, #tpu.memory_space<vmem>>, %arg4: memref<20x144xbf16, #tpu.memory_space<vmem>>, %arg5: memref<20x1xf32, #tpu.memory_space<vmem>>, %arg6: memref<9x1x64xf32, #tpu.memory_space<vmem>>, %arg7: memref<9x1x64xf32, #tpu.memory_space<vmem>>, %arg8: memref<64x256xbf16, #tpu.memory_space<vmem>>, %arg9: memref<1x20x256xf32, #tpu.memory_space<vmem>>, %arg10: memref<10x96xf32, #tpu.memory_space<vmem>>, %arg11: memref<20x96xf32, #tpu.memory_space<vmem>>, %arg12: memref<144x64xbf16, #tpu.memory_space<vmem>>) attributes {dimension_semantics = [#tpu.dimension_semantics<parallel>], iteration_bounds = array<i64: 2>, scalar_prefetch = 0 : i64, scratch_operands = 3 : i64, tpu.core_type = #tpu.core_type<tc>, window_params = [{transform_indices = @transform_0, window_bounds = array<i64: 1, 27, 64>}, {pipeline_mode = #tpu.pipeline_mode<synchronous>, transform_indices = @transform_1, window_bounds = array<i64: 10, 27>}, {pipeline_mode = #tpu.pipeline_mode<synchronous>, transform_indices = @transform_2, window_bounds = array<i64: 10, 1>}, {pipeline_mode = #tpu.pipeline_mode<synchronous>, transform_indices = @transform_3, window_bounds = array<i64: 20, 144>}, {pipeline_mode = #tpu.pipeline_mode<synchronous>, transform_indices = @transform_4, window_bounds = array<i64: 20, 1>}, {pipeline_mode = #tpu.pipeline_mode<synchronous>, transform_indices = @transform_5, window_bounds = array<i64: 9, 1, 64>}, {pipeline_mode = #tpu.pipeline_mode<synchronous>, transform_indices = @transform_6, window_bounds = array<i64: 9, 1, 64>}, {pipeline_mode = #tpu.pipeline_mode<synchronous>, transform_indices = @transform_7, window_bounds = array<i64: 64, 256>}, {transform_indices = @transform_8, window_bounds = array<i64: 1, 20, 256>}]} {
    %c0 = arith.constant 0 : index
    %c0_0 = arith.constant 0 : index
    %0 = vector.load %arg2[%c0, %c0_0] : memref<10x27xbf16, #tpu.memory_space<vmem>>, vector<10x27xbf16>
    %c0_1 = arith.constant 0 : index
    %c0_2 = arith.constant 0 : index
    %c0_3 = arith.constant 0 : index
    %1 = vector.load %arg1[%c0_1, %c0_2, %c0_3] : memref<1x27x64xbf16, #tpu.memory_space<vmem>>, vector<1x27x64xbf16>
    %2 = vector.shape_cast %1 : vector<1x27x64xbf16> to vector<27x64xbf16>
    %cst = arith.constant dense<0.000000e+00> : vector<10x64xf32>
    %3 = tpu.matmul %0, %2, %cst {dimension_numbers = #tpu.dot_dimension_numbers<[1], [0], [0], [1], [0, 0, 1, 1], [], []>} : vector<10x27xbf16>, vector<27x64xbf16>, vector<10x64xf32> -> vector<10x64xf32>
    %c0_4 = arith.constant 0 : index
    %c0_5 = arith.constant 0 : index
    %4 = vector.load %arg3[%c0_4, %c0_5] : memref<10x1xf32, #tpu.memory_space<vmem>>, vector<10x1xf32>
    %5 = vector.broadcast %4 : vector<10x1xf32> to vector<10x64xf32>
    %6 = arith.addf %3, %5 : vector<10x64xf32>
    %cst_6 = arith.constant 0.000000e+00 : f32
    %7 = vector.broadcast %cst_6 : f32 to vector<10x96xf32>
    %c0_7 = arith.constant 0 : index
    %c0_8 = arith.constant 0 : index
    %8 = vector.load %arg10[%c0_7, %c0_8] : memref<10x96xf32, #tpu.memory_space<vmem>>, vector<10x96xf32>
    tpu.vector_store %arg10[%c0_7, %c0_8], %7 {strides = array<i32>} : memref<10x96xf32, #tpu.memory_space<vmem>>, vector<10x96xf32>,
    %cst_9 = arith.constant 0.000000e+00 : bf16
    %9 = vector.broadcast %cst_9 : bf16 to vector<144x64xbf16>
    %c0_10 = arith.constant 0 : index
    %c0_11 = arith.constant 0 : index
    %10 = vector.load %arg12[%c0_10, %c0_11] : memref<144x64xbf16, #tpu.memory_space<vmem>>, vector<144x64xbf16>
    tpu.vector_store %arg12[%c0_10, %c0_11], %9 {strides = array<i32>} : memref<144x64xbf16, #tpu.memory_space<vmem>>, vector<144x64xbf16>,
    %c0_12 = arith.constant 0 : index
    %c16 = arith.constant 16 : index
    %11 = vector.load %arg10[%c0_12, %c16] : memref<10x96xf32, #tpu.memory_space<vmem>>, vector<10x64xf32>
    tpu.vector_store %arg10[%c0_12, %c16], %6 {strides = array<i32>} : memref<10x96xf32, #tpu.memory_space<vmem>>, vector<10x64xf32>,
    %c0_13 = arith.constant 0 : index
    %c0_14 = arith.constant 0 : index
    %12 = vector.load %arg10[%c0_13, %c0_14] : memref<10x96xf32, #tpu.memory_space<vmem>>, vector<10x96xf32>
    %13 = vector.extract_strided_slice %12 {offsets = [0, 7], sizes = [10, 64], strides = [1, 1]} : vector<10x96xf32> to vector<10x64xf32>
    %c0_15 = arith.constant 0 : index
    %c0_16 = arith.constant 0 : index
    %c0_17 = arith.constant 0 : index
    %14 = vector.load %arg6[%c0_15, %c0_16, %c0_17] : memref<9x1x64xf32, #tpu.memory_space<vmem>>, vector<1x1x64xf32>
    %15 = vector.shape_cast %14 : vector<1x1x64xf32> to vector<1x64xf32>
    %16 = vector.broadcast %15 : vector<1x64xf32> to vector<10x64xf32>
    %17 = arith.mulf %13, %16 : vector<10x64xf32>
    %18 = arith.truncf %17 : vector<10x64xf32> to vector<10x64xbf16>
    %c0_18 = arith.constant 0 : index
    %c0_19 = arith.constant 0 : index
    %19 = vector.load %arg12[%c0_18, %c0_19] : memref<144x64xbf16, #tpu.memory_space<vmem>>, vector<10x64xbf16>
    tpu.vector_store %arg12[%c0_18, %c0_19], %18 {strides = array<i32>} : memref<144x64xbf16, #tpu.memory_space<vmem>>, vector<10x64xbf16>,
    %20 = vector.extract_strided_slice %12 {offsets = [0, 8], sizes = [10, 64], strides = [1, 1]} : vector<10x96xf32> to vector<10x64xf32>
    %c1 = arith.constant 1 : index
    %c0_20 = arith.constant 0 : index
    %c0_21 = arith.constant 0 : index
    %21 = vector.load %arg6[%c1, %c0_20, %c0_21] : memref<9x1x64xf32, #tpu.memory_space<vmem>>, vector<1x1x64xf32>
    %22 = vector.shape_cast %21 : vector<1x1x64xf32> to vector<1x64xf32>
    %23 = vector.broadcast %22 : vector<1x64xf32> to vector<10x64xf32>
    %24 = arith.mulf %20, %23 : vector<10x64xf32>
    %25 = arith.truncf %24 : vector<10x64xf32> to vector<10x64xbf16>
    %c16_22 = arith.constant 16 : index
    %c0_23 = arith.constant 0 : index
    %26 = vector.load %arg12[%c16_22, %c0_23] : memref<144x64xbf16, #tpu.memory_space<vmem>>, vector<10x64xbf16>
    tpu.vector_store %arg12[%c16_22, %c0_23], %25 {strides = array<i32>} : memref<144x64xbf16, #tpu.memory_space<vmem>>, vector<10x64xbf16>,
    %27 = vector.extract_strided_slice %12 {offsets = [0, 9], sizes = [10, 64], strides = [1, 1]} : vector<10x96xf32> to vector<10x64xf32>
    %c2 = arith.constant 2 : index
    %c0_24 = arith.constant 0 : index
    %c0_25 = arith.constant 0 : index
    %28 = vector.load %arg6[%c2, %c0_24, %c0_25] : memref<9x1x64xf32, #tpu.memory_space<vmem>>, vector<1x1x64xf32>
    %29 = vector.shape_cast %28 : vector<1x1x64xf32> to vector<1x64xf32>
    %30 = vector.broadcast %29 : vector<1x64xf32> to vector<10x64xf32>
    %31 = arith.mulf %27, %30 : vector<10x64xf32>
    %32 = arith.truncf %31 : vector<10x64xf32> to vector<10x64xbf16>
    %c32 = arith.constant 32 : index
    %c0_26 = arith.constant 0 : index
    %33 = vector.load %arg12[%c32, %c0_26] : memref<144x64xbf16, #tpu.memory_space<vmem>>, vector<10x64xbf16>
    tpu.vector_store %arg12[%c32, %c0_26], %32 {strides = array<i32>} : memref<144x64xbf16, #tpu.memory_space<vmem>>, vector<10x64xbf16>,
    %34 = vector.extract_strided_slice %12 {offsets = [0, 15], sizes = [10, 64], strides = [1, 1]} : vector<10x96xf32> to vector<10x64xf32>
    %c3 = arith.constant 3 : index
    %c0_27 = arith.constant 0 : index
    %c0_28 = arith.constant 0 : index
    %35 = vector.load %arg6[%c3, %c0_27, %c0_28] : memref<9x1x64xf32, #tpu.memory_space<vmem>>, vector<1x1x64xf32>
    %36 = vector.shape_cast %35 : vector<1x1x64xf32> to vector<1x64xf32>
    %37 = vector.broadcast %36 : vector<1x64xf32> to vector<10x64xf32>
    %38 = arith.mulf %34, %37 : vector<10x64xf32>
    %39 = arith.truncf %38 : vector<10x64xf32> to vector<10x64xbf16>
    %c48 = arith.constant 48 : index
    %c0_29 = arith.constant 0 : index
    %40 = vector.load %arg12[%c48, %c0_29] : memref<144x64xbf16, #tpu.memory_space<vmem>>, vector<10x64xbf16>
    tpu.vector_store %arg12[%c48, %c0_29], %39 {strides = array<i32>} : memref<144x64xbf16, #tpu.memory_space<vmem>>, vector<10x64xbf16>,
    %41 = vector.extract_strided_slice %12 {offsets = [0, 16], sizes = [10, 64], strides = [1, 1]} : vector<10x96xf32> to vector<10x64xf32>
    %c4 = arith.constant 4 : index
    %c0_30 = arith.constant 0 : index
    %c0_31 = arith.constant 0 : index
    %42 = vector.load %arg6[%c4, %c0_30, %c0_31] : memref<9x1x64xf32, #tpu.memory_space<vmem>>, vector<1x1x64xf32>
    %43 = vector.shape_cast %42 : vector<1x1x64xf32> to vector<1x64xf32>
    %44 = vector.broadcast %43 : vector<1x64xf32> to vector<10x64xf32>
    %45 = arith.mulf %41, %44 : vector<10x64xf32>
    %46 = arith.truncf %45 : vector<10x64xf32> to vector<10x64xbf16>
    %c64 = arith.constant 64 : index
    %c0_32 = arith.constant 0 : index
    %47 = vector.load %arg12[%c64, %c0_32] : memref<144x64xbf16, #tpu.memory_space<vmem>>, vector<10x64xbf16>
    tpu.vector_store %arg12[%c64, %c0_32], %46 {strides = array<i32>} : memref<144x64xbf16, #tpu.memory_space<vmem>>, vector<10x64xbf16>,
    %48 = vector.extract_strided_slice %12 {offsets = [0, 17], sizes = [10, 64], strides = [1, 1]} : vector<10x96xf32> to vector<10x64xf32>
    %c5 = arith.constant 5 : index
    %c0_33 = arith.constant 0 : index
    %c0_34 = arith.constant 0 : index
    %49 = vector.load %arg6[%c5, %c0_33, %c0_34] : memref<9x1x64xf32, #tpu.memory_space<vmem>>, vector<1x1x64xf32>
    %50 = vector.shape_cast %49 : vector<1x1x64xf32> to vector<1x64xf32>
    %51 = vector.broadcast %50 : vector<1x64xf32> to vector<10x64xf32>
    %52 = arith.mulf %48, %51 : vector<10x64xf32>
    %53 = arith.truncf %52 : vector<10x64xf32> to vector<10x64xbf16>
    %c80 = arith.constant 80 : index
    %c0_35 = arith.constant 0 : index
    %54 = vector.load %arg12[%c80, %c0_35] : memref<144x64xbf16, #tpu.memory_space<vmem>>, vector<10x64xbf16>
    tpu.vector_store %arg12[%c80, %c0_35], %53 {strides = array<i32>} : memref<144x64xbf16, #tpu.memory_space<vmem>>, vector<10x64xbf16>,
    %55 = vector.extract_strided_slice %12 {offsets = [0, 23], sizes = [10, 64], strides = [1, 1]} : vector<10x96xf32> to vector<10x64xf32>
    %c6 = arith.constant 6 : index
    %c0_36 = arith.constant 0 : index
    %c0_37 = arith.constant 0 : index
    %56 = vector.load %arg6[%c6, %c0_36, %c0_37] : memref<9x1x64xf32, #tpu.memory_space<vmem>>, vector<1x1x64xf32>
    %57 = vector.shape_cast %56 : vector<1x1x64xf32> to vector<1x64xf32>
    %58 = vector.broadcast %57 : vector<1x64xf32> to vector<10x64xf32>
    %59 = arith.mulf %55, %58 : vector<10x64xf32>
    %60 = arith.truncf %59 : vector<10x64xf32> to vector<10x64xbf16>
    %c96 = arith.constant 96 : index
    %c0_38 = arith.constant 0 : index
    %61 = vector.load %arg12[%c96, %c0_38] : memref<144x64xbf16, #tpu.memory_space<vmem>>, vector<10x64xbf16>
    tpu.vector_store %arg12[%c96, %c0_38], %60 {strides = array<i32>} : memref<144x64xbf16, #tpu.memory_space<vmem>>, vector<10x64xbf16>,
    %62 = vector.extract_strided_slice %12 {offsets = [0, 24], sizes = [10, 64], strides = [1, 1]} : vector<10x96xf32> to vector<10x64xf32>
    %c7 = arith.constant 7 : index
    %c0_39 = arith.constant 0 : index
    %c0_40 = arith.constant 0 : index
    %63 = vector.load %arg6[%c7, %c0_39, %c0_40] : memref<9x1x64xf32, #tpu.memory_space<vmem>>, vector<1x1x64xf32>
    %64 = vector.shape_cast %63 : vector<1x1x64xf32> to vector<1x64xf32>
    %65 = vector.broadcast %64 : vector<1x64xf32> to vector<10x64xf32>
    %66 = arith.mulf %62, %65 : vector<10x64xf32>
    %67 = arith.truncf %66 : vector<10x64xf32> to vector<10x64xbf16>
    %c112 = arith.constant 112 : index
    %c0_41 = arith.constant 0 : index
    %68 = vector.load %arg12[%c112, %c0_41] : memref<144x64xbf16, #tpu.memory_space<vmem>>, vector<10x64xbf16>
    tpu.vector_store %arg12[%c112, %c0_41], %67 {strides = array<i32>} : memref<144x64xbf16, #tpu.memory_space<vmem>>, vector<10x64xbf16>,
    %69 = vector.extract_strided_slice %12 {offsets = [0, 25], sizes = [10, 64], strides = [1, 1]} : vector<10x96xf32> to vector<10x64xf32>
    %c8 = arith.constant 8 : index
    %c0_42 = arith.constant 0 : index
    %c0_43 = arith.constant 0 : index
    %70 = vector.load %arg6[%c8, %c0_42, %c0_43] : memref<9x1x64xf32, #tpu.memory_space<vmem>>, vector<1x1x64xf32>
    %71 = vector.shape_cast %70 : vector<1x1x64xf32> to vector<1x64xf32>
    %72 = vector.broadcast %71 : vector<1x64xf32> to vector<10x64xf32>
    %73 = arith.mulf %69, %72 : vector<10x64xf32>
    %74 = arith.truncf %73 : vector<10x64xf32> to vector<10x64xbf16>
    %c128 = arith.constant 128 : index
    %c0_44 = arith.constant 0 : index
    %75 = vector.load %arg12[%c128, %c0_44] : memref<144x64xbf16, #tpu.memory_space<vmem>>, vector<10x64xbf16>
    tpu.vector_store %arg12[%c128, %c0_44], %74 {strides = array<i32>} : memref<144x64xbf16, #tpu.memory_space<vmem>>, vector<10x64xbf16>,
    %c0_45 = arith.constant 0 : index
    %c0_46 = arith.constant 0 : index
    %76 = vector.load %arg4[%c0_45, %c0_46] : memref<20x144xbf16, #tpu.memory_space<vmem>>, vector<20x144xbf16>
    %c0_47 = arith.constant 0 : index
    %c0_48 = arith.constant 0 : index
    %77 = vector.load %arg12[%c0_47, %c0_48] : memref<144x64xbf16, #tpu.memory_space<vmem>>, vector<144x64xbf16>
    %cst_49 = arith.constant dense<0.000000e+00> : vector<20x64xf32>
    %78 = tpu.matmul %76, %77, %cst_49 {dimension_numbers = #tpu.dot_dimension_numbers<[1], [0], [0], [1], [0, 0, 1, 1], [], []>} : vector<20x144xbf16>, vector<144x64xbf16>, vector<20x64xf32> -> vector<20x64xf32>
    %c0_50 = arith.constant 0 : index
    %c0_51 = arith.constant 0 : index
    %79 = vector.load %arg5[%c0_50, %c0_51] : memref<20x1xf32, #tpu.memory_space<vmem>>, vector<20x1xf32>
    %80 = vector.broadcast %79 : vector<20x1xf32> to vector<20x64xf32>
    %81 = arith.addf %78, %80 : vector<20x64xf32>
    %cst_52 = arith.constant 0.000000e+00 : f32
    %82 = vector.broadcast %cst_52 : f32 to vector<20x96xf32>
    %c0_53 = arith.constant 0 : index
    %c0_54 = arith.constant 0 : index
    %83 = vector.load %arg11[%c0_53, %c0_54] : memref<20x96xf32, #tpu.memory_space<vmem>>, vector<20x96xf32>
    tpu.vector_store %arg11[%c0_53, %c0_54], %82 {strides = array<i32>} : memref<20x96xf32, #tpu.memory_space<vmem>>, vector<20x96xf32>,
    %c0_55 = arith.constant 0 : index
    %c16_56 = arith.constant 16 : index
    %84 = vector.load %arg11[%c0_55, %c16_56] : memref<20x96xf32, #tpu.memory_space<vmem>>, vector<20x64xf32>
    tpu.vector_store %arg11[%c0_55, %c16_56], %81 {strides = array<i32>} : memref<20x96xf32, #tpu.memory_space<vmem>>, vector<20x64xf32>,
    %c0_57 = arith.constant 0 : index
    %c0_58 = arith.constant 0 : index
    %85 = vector.load %arg11[%c0_57, %c0_58] : memref<20x96xf32, #tpu.memory_space<vmem>>, vector<20x96xf32>
    %86 = vector.extract_strided_slice %85 {offsets = [0, 7], sizes = [20, 64], strides = [1, 1]} : vector<20x96xf32> to vector<20x64xf32>
    %c0_59 = arith.constant 0 : index
    %c0_60 = arith.constant 0 : index
    %c0_61 = arith.constant 0 : index
    %87 = vector.load %arg7[%c0_59, %c0_60, %c0_61] : memref<9x1x64xf32, #tpu.memory_space<vmem>>, vector<1x1x64xf32>
    %88 = vector.shape_cast %87 : vector<1x1x64xf32> to vector<1x64xf32>
    %89 = vector.broadcast %88 : vector<1x64xf32> to vector<20x64xf32>
    %90 = arith.addf %86, %89 : vector<20x64xf32>
    %91 = vector.extract_strided_slice %85 {offsets = [0, 8], sizes = [20, 64], strides = [1, 1]} : vector<20x96xf32> to vector<20x64xf32>
    %c1_62 = arith.constant 1 : index
    %c0_63 = arith.constant 0 : index
    %c0_64 = arith.constant 0 : index
    %92 = vector.load %arg7[%c1_62, %c0_63, %c0_64] : memref<9x1x64xf32, #tpu.memory_space<vmem>>, vector<1x1x64xf32>
    %93 = vector.shape_cast %92 : vector<1x1x64xf32> to vector<1x64xf32>
    %94 = vector.broadcast %93 : vector<1x64xf32> to vector<20x64xf32>
    %95 = arith.addf %91, %94 : vector<20x64xf32>
    %96 = arith.maximumf %90, %95 : vector<20x64xf32>
    %97 = vector.extract_strided_slice %85 {offsets = [0, 9], sizes = [20, 64], strides = [1, 1]} : vector<20x96xf32> to vector<20x64xf32>
    %c2_65 = arith.constant 2 : index
    %c0_66 = arith.constant 0 : index
    %c0_67 = arith.constant 0 : index
    %98 = vector.load %arg7[%c2_65, %c0_66, %c0_67] : memref<9x1x64xf32, #tpu.memory_space<vmem>>, vector<1x1x64xf32>
    %99 = vector.shape_cast %98 : vector<1x1x64xf32> to vector<1x64xf32>
    %100 = vector.broadcast %99 : vector<1x64xf32> to vector<20x64xf32>
    %101 = arith.addf %97, %100 : vector<20x64xf32>
    %102 = arith.maximumf %96, %101 : vector<20x64xf32>
    %103 = vector.extract_strided_slice %85 {offsets = [0, 15], sizes = [20, 64], strides = [1, 1]} : vector<20x96xf32> to vector<20x64xf32>
    %c3_68 = arith.constant 3 : index
    %c0_69 = arith.constant 0 : index
    %c0_70 = arith.constant 0 : index
    %104 = vector.load %arg7[%c3_68, %c0_69, %c0_70] : memref<9x1x64xf32, #tpu.memory_space<vmem>>, vector<1x1x64xf32>
    %105 = vector.shape_cast %104 : vector<1x1x64xf32> to vector<1x64xf32>
    %106 = vector.broadcast %105 : vector<1x64xf32> to vector<20x64xf32>
    %107 = arith.addf %103, %106 : vector<20x64xf32>
    %108 = arith.maximumf %102, %107 : vector<20x64xf32>
    %109 = vector.extract_strided_slice %85 {offsets = [0, 16], sizes = [20, 64], strides = [1, 1]} : vector<20x96xf32> to vector<20x64xf32>
    %c4_71 = arith.constant 4 : index
    %c0_72 = arith.constant 0 : index
    %c0_73 = arith.constant 0 : index
    %110 = vector.load %arg7[%c4_71, %c0_72, %c0_73] : memref<9x1x64xf32, #tpu.memory_space<vmem>>, vector<1x1x64xf32>
    %111 = vector.shape_cast %110 : vector<1x1x64xf32> to vector<1x64xf32>
    %112 = vector.broadcast %111 : vector<1x64xf32> to vector<20x64xf32>
    %113 = arith.addf %109, %112 : vector<20x64xf32>
    %114 = arith.maximumf %108, %113 : vector<20x64xf32>
    %115 = vector.extract_strided_slice %85 {offsets = [0, 17], sizes = [20, 64], strides = [1, 1]} : vector<20x96xf32> to vector<20x64xf32>
    %c5_74 = arith.constant 5 : index
    %c0_75 = arith.constant 0 : index
    %c0_76 = arith.constant 0 : index
    %116 = vector.load %arg7[%c5_74, %c0_75, %c0_76] : memref<9x1x64xf32, #tpu.memory_space<vmem>>, vector<1x1x64xf32>
    %117 = vector.shape_cast %116 : vector<1x1x64xf32> to vector<1x64xf32>
    %118 = vector.broadcast %117 : vector<1x64xf32> to vector<20x64xf32>
    %119 = arith.addf %115, %118 : vector<20x64xf32>
    %120 = arith.maximumf %114, %119 : vector<20x64xf32>
    %121 = vector.extract_strided_slice %85 {offsets = [0, 23], sizes = [20, 64], strides = [1, 1]} : vector<20x96xf32> to vector<20x64xf32>
    %c6_77 = arith.constant 6 : index
    %c0_78 = arith.constant 0 : index
    %c0_79 = arith.constant 0 : index
    %122 = vector.load %arg7[%c6_77, %c0_78, %c0_79] : memref<9x1x64xf32, #tpu.memory_space<vmem>>, vector<1x1x64xf32>
    %123 = vector.shape_cast %122 : vector<1x1x64xf32> to vector<1x64xf32>
    %124 = vector.broadcast %123 : vector<1x64xf32> to vector<20x64xf32>
    %125 = arith.addf %121, %124 : vector<20x64xf32>
    %126 = arith.maximumf %120, %125 : vector<20x64xf32>
    %127 = vector.extract_strided_slice %85 {offsets = [0, 24], sizes = [20, 64], strides = [1, 1]} : vector<20x96xf32> to vector<20x64xf32>
    %c7_80 = arith.constant 7 : index
    %c0_81 = arith.constant 0 : index
    %c0_82 = arith.constant 0 : index
    %128 = vector.load %arg7[%c7_80, %c0_81, %c0_82] : memref<9x1x64xf32, #tpu.memory_space<vmem>>, vector<1x1x64xf32>
    %129 = vector.shape_cast %128 : vector<1x1x64xf32> to vector<1x64xf32>
    %130 = vector.broadcast %129 : vector<1x64xf32> to vector<20x64xf32>
    %131 = arith.addf %127, %130 : vector<20x64xf32>
    %132 = arith.maximumf %126, %131 : vector<20x64xf32>
    %133 = vector.extract_strided_slice %85 {offsets = [0, 25], sizes = [20, 64], strides = [1, 1]} : vector<20x96xf32> to vector<20x64xf32>
    %c8_83 = arith.constant 8 : index
    %c0_84 = arith.constant 0 : index
    %c0_85 = arith.constant 0 : index
    %134 = vector.load %arg7[%c8_83, %c0_84, %c0_85] : memref<9x1x64xf32, #tpu.memory_space<vmem>>, vector<1x1x64xf32>
    %135 = vector.shape_cast %134 : vector<1x1x64xf32> to vector<1x64xf32>
    %136 = vector.broadcast %135 : vector<1x64xf32> to vector<20x64xf32>
    %137 = arith.addf %133, %136 : vector<20x64xf32>
    %138 = arith.maximumf %132, %137 : vector<20x64xf32>
    %139 = arith.truncf %138 : vector<20x64xf32> to vector<20x64xbf16>
    %c0_86 = arith.constant 0 : index
    %c0_87 = arith.constant 0 : index
    %140 = vector.load %arg8[%c0_86, %c0_87] : memref<64x256xbf16, #tpu.memory_space<vmem>>, vector<64x256xbf16>
    %cst_88 = arith.constant dense<0.000000e+00> : vector<20x256xf32>
    %141 = tpu.matmul %139, %140, %cst_88 {dimension_numbers = #tpu.dot_dimension_numbers<[1], [0], [0], [1], [0, 0, 1, 1], [], []>} : vector<20x64xbf16>, vector<64x256xbf16>, vector<20x256xf32> -> vector<20x256xf32>
    %c0_89 = arith.constant 0 : index
    %c0_90 = arith.constant 0 : index
    %c0_91 = arith.constant 0 : index
    %142 = vector.load %arg9[%c0_89, %c0_90, %c0_91] : memref<1x20x256xf32, #tpu.memory_space<vmem>>, vector<1x20x256xf32>
    %143 = vector.shape_cast %142 : vector<1x20x256xf32> to vector<20x256xf32>
    %144 = vector.shape_cast %141 : vector<20x256xf32> to vector<1x20x256xf32>
    tpu.vector_store %arg9[%c0_89, %c0_90, %c0_91], %144 {strides = array<i32>} : memref<1x20x256xf32, #tpu.memory_space<vmem>>, vector<1x20x256xf32>,
    return
  }
  func.func @transform_0(%arg0: i32) -> (i32, i32, i32) {
    %c0_i32 = arith.constant 0 : i32
    %c0_i32_0 = arith.constant 0 : i32
    %c0_i32_1 = arith.constant 0 : i32
    return %arg0, %c0_i32, %c0_i32_0 : i32, i32, i32
  }
  func.func @transform_1(%arg0: i32) -> (i32, i32) {
    %c0_i32 = arith.constant 0 : i32
    %c0_i32_0 = arith.constant 0 : i32
    %c0_i32_1 = arith.constant 0 : i32
    return %c0_i32, %c0_i32_0 : i32, i32
  }
  func.func @transform_2(%arg0: i32) -> (i32, i32) {
    %c0_i32 = arith.constant 0 : i32
    %c0_i32_0 = arith.constant 0 : i32
    %c0_i32_1 = arith.constant 0 : i32
    return %c0_i32, %c0_i32_0 : i32, i32
  }
  func.func @transform_3(%arg0: i32) -> (i32, i32) {
    %c0_i32 = arith.constant 0 : i32
    %c0_i32_0 = arith.constant 0 : i32
    %c0_i32_1 = arith.constant 0 : i32
    return %c0_i32, %c0_i32_0 : i32, i32
  }
  func.func @transform_4(%arg0: i32) -> (i32, i32) {
    %c0_i32 = arith.constant 0 : i32
    %c0_i32_0 = arith.constant 0 : i32
    %c0_i32_1 = arith.constant 0 : i32
    return %c0_i32, %c0_i32_0 : i32, i32
  }
  func.func @transform_5(%arg0: i32) -> (i32, i32, i32) {
    %c0_i32 = arith.constant 0 : i32
    %c0_i32_0 = arith.constant 0 : i32
    %c0_i32_1 = arith.constant 0 : i32
    %c0_i32_2 = arith.constant 0 : i32
    return %c0_i32, %c0_i32_0, %c0_i32_1 : i32, i32, i32
  }
  func.func @transform_6(%arg0: i32) -> (i32, i32, i32) {
    %c0_i32 = arith.constant 0 : i32
    %c0_i32_0 = arith.constant 0 : i32
    %c0_i32_1 = arith.constant 0 : i32
    %c0_i32_2 = arith.constant 0 : i32
    return %c0_i32, %c0_i32_0, %c0_i32_1 : i32, i32, i32
  }
  func.func @transform_7(%arg0: i32) -> (i32, i32) {
    %c0_i32 = arith.constant 0 : i32
    %c0_i32_0 = arith.constant 0 : i32
    %c0_i32_1 = arith.constant 0 : i32
    return %c0_i32, %c0_i32_0 : i32, i32
  }
  func.func @transform_8(%arg0: i32) -> (i32, i32, i32) {
    %c0_i32 = arith.constant 0 : i32
    %c0_i32_0 = arith.constant 0 : i32
    %c0_i32_1 = arith.constant 0 : i32
    return %arg0, %c0_i32, %c0_i32_0 : i32, i32, i32
  }
}

</mosaic_0001>

<llo_original>
// kernel: simple_net_forward.1
$region0: #{simple_net_forward.1}
  #allocation0 [shape = 'u32[]', space=smem, size = 0x4, offset = 0x4, fixed_abs, tag = 'smem constant byte address 0x4 - core index']
  #allocation1 [shape = 'u32[144,128]{1,0:T(1,128)}', space=vmem, size = 0x12000, scoped, tag = 'internal scratch']
  #allocation2 [shape = 'f32[10,96]{1,0:T(8,128)}', space=vmem, size = 0x2000, scoped, tag = 'scratch operand']
  #allocation3 [shape = 'f32[20,96]{1,0:T(8,128)}', space=vmem, size = 0x3000, scoped, tag = 'scratch operand']
  #allocation4 [shape = 'bf16[144,64]{1,0:T(16,128)(2,1)}', space=vmem, size = 0x9000, scoped, tag = 'scratch operand']
  %s0 = inlined_call_operand.vmem [shape: bf16[2,27,64], index: 0, kind: input, shape index: {}]
  %s1 = inlined_call_operand.vmem [shape: bf16[10,27], index: 1, kind: input, shape index: {}]
  %s2 = inlined_call_operand.vmem [shape: f32[10,1], index: 2, kind: input, shape index: {}]
  %s3 = inlined_call_operand.vmem [shape: bf16[20,144], index: 3, kind: input, shape index: {}]
  %s4 = inlined_call_operand.vmem [shape: f32[20,1], index: 4, kind: input, shape index: {}]
  %s5 = inlined_call_operand.vmem [shape: f32[9,1,64], index: 5, kind: input, shape index: {}]
  %s6 = inlined_call_operand.vmem [shape: f32[9,1,64], index: 6, kind: input, shape index: {}]
  %s7 = inlined_call_operand.vmem [shape: bf16[64,256], index: 7, kind: input, shape index: {}]
  %s8 = inlined_call_operand.vmem [shape: f32[2,20,256], index: 8, kind: output, shape index: {}]
  %s9 = sld [smem:[#allocation0]]
  $region65: #{simple_net_forward.1} parent=0
    _
  %s11 = ssub.s32 1, %s9
  %s12 = scalar_select 0, %s11, %s9
  loop: start=0, step=1, limit=4
  $region2: #{simple_net_forward.1} parent=0 // loop_pre_header
    _
  $region3: #{simple_net_forward.1} parent=0 // loop_header
    %s14 = sphi 0, %s18
    %p15 = scmp.ge.s32.totalorder %s14, 4
    %s24 = sphi 0, %s26
    %s27 = sphi 0, %s24
    %s28 = sphi 0, %s27
    %s44 = sphi 0, %s28
    %s48 = sphi 0, %s48
    %s50 = sphi 0, %s48
    %s51 = sphi 0, %s50
    %s65 = sphi 0, %s51
    %s69 = sphi 0, %s69
    %s71 = sphi 0, %s69
    %s72 = sphi 0, %s71
    %s86 = sphi 0, %s72
    %s90 = sphi 0, %s90
    %s92 = sphi 0, %s90
    %s93 = sphi 0, %s92
    %s107 = sphi 0, %s93
    %s111 = sphi 0, %s111
    %s113 = sphi 0, %s111
    %s114 = sphi 0, %s113
    %s128 = sphi 0, %s114
    %s132 = sphi 0, %s132
    %s134 = sphi 0, %s132
    %s135 = sphi 0, %s134
    %s149 = sphi 0, %s135
    %s153 = sphi 0, %s153
    %s155 = sphi 0, %s153
    %s156 = sphi 0, %s155
    %s170 = sphi 0, %s156
    %s174 = sphi 0, %s174
    %s176 = sphi 0, %s174
    %s177 = sphi 0, %s176
    %s191 = sphi 0, %s177
    %s197 = sphi 0, %s199
    %s200 = sphi 0, %s197
    %s201 = sphi 0, %s200
    %s217 = sphi 0, %s201
  $region4: #{simple_net_forward.1} parent=0 // loop_header_branch
    %17 = sbr.rel (%p15) target = $region8
  $region5: #{simple_net_forward.1} parent=0 // loop_body
    %s19 = ssub.s32 %s14, 1
    %s20 = ssub.s32 %s14, 2
    %s21 = sadd.s32 %s14, 1
    %s22 = ssub.s32 %s14, %s21
    %p23 = scmp.eq.s32.totalorder %s22, 0
    %s25 = sadd.s32 %s24, 1
    %s26 = scalar_select %p23, %s24, %s25
    %p29 = pneg %p23
    %p30 = scmp.eq.s32.totalorder %s14, 1
    %p31 = por %p29, %p30
    %p32 = scmp.ne.s32.totalorder %s24, %s27
    %p33 = scmp.eq.s32.totalorder %s14, 0
    %p34 = por %p32, %p33
    %p35 = scmp.ne.s32.totalorder %s24, %s27
    %p36 = scmp.eq.s32.totalorder %s19, 1
    %p37 = por %p35, %p36
    %p38 = scmp.ne.s32.totalorder %s27, %s28
    %p39 = scmp.eq.s32.totalorder %s19, 0
    %p40 = por %p38, %p39
    %p41 = scmp.ne.s32.totalorder %s27, %s28
    %p42 = scmp.eq.s32.totalorder %s20, 1
    %p43 = por %p41, %p42
    %p45 = scmp.ne.s32.totalorder %s28, %s44
    %p46 = scmp.eq.s32.totalorder %s20, 0
    %p47 = por %p45, %p46
    %s49 = sadd.s32 %s48, 1
    %p52 = scmp.eq.s32.totalorder %s14, 1
    %p53 = scmp.ne.s32.totalorder %s48, %s50
    %p54 = scmp.eq.s32.totalorder %s14, 0
    %p55 = por %p53, %p54
    %p56 = scmp.ne.s32.totalorder %s48, %s50
    %p57 = scmp.eq.s32.totalorder %s19, 1
    %p58 = por %p56, %p57
    %p59 = scmp.ne.s32.totalorder %s50, %s51
    %p60 = scmp.eq.s32.totalorder %s19, 0
    %p61 = por %p59, %p60
    %p62 = scmp.ne.s32.totalorder %s50, %s51
    %p63 = scmp.eq.s32.totalorder %s20, 1
    %p64 = por %p62, %p63
    %p66 = scmp.ne.s32.totalorder %s51, %s65
    %p67 = scmp.eq.s32.totalorder %s20, 0
    %p68 = por %p66, %p67
    %s70 = sadd.s32 %s69, 1
    %p73 = scmp.eq.s32.totalorder %s14, 1
    %p74 = scmp.ne.s32.totalorder %s69, %s71
    %p75 = scmp.eq.s32.totalorder %s14, 0
    %p76 = por %p74, %p75
    %p77 = scmp.ne.s32.totalorder %s69, %s71
    %p78 = scmp.eq.s32.totalorder %s19, 1
    %p79 = por %p77, %p78
    %p80 = scmp.ne.s32.totalorder %s71, %s72
    %p81 = scmp.eq.s32.totalorder %s19, 0
    %p82 = por %p80, %p81
    %p83 = scmp.ne.s32.totalorder %s71, %s72
    %p84 = scmp.eq.s32.totalorder %s20, 1
    %p85 = por %p83, %p84
    %p87 = scmp.ne.s32.totalorder %s72, %s86
    %p88 = scmp.eq.s32.totalorder %s20, 0
    %p89 = por %p87, %p88
    %s91 = sadd.s32 %s90, 1
    %p94 = scmp.eq.s32.totalorder %s14, 1
    %p95 = scmp.ne.s32.totalorder %s90, %s92
    %p96 = scmp.eq.s32.totalorder %s14, 0
    %p97 = por %p95, %p96
    %p98 = scmp.ne.s32.totalorder %s90, %s92
    %p99 = scmp.eq.s32.totalorder %s19, 1
    %p100 = por %p98, %p99
    %p101 = scmp.ne.s32.totalorder %s92, %s93
    %p102 = scmp.eq.s32.totalorder %s19, 0
    %p103 = por %p101, %p102
    %p104 = scmp.ne.s32.totalorder %s92, %s93
    %p105 = scmp.eq.s32.totalorder %s20, 1
    %p106 = por %p104, %p105
    %p108 = scmp.ne.s32.totalorder %s93, %s107
    %p109 = scmp.eq.s32.totalorder %s20, 0
    %p110 = por %p108, %p109
    %s112 = sadd.s32 %s111, 1
    %p115 = scmp.eq.s32.totalorder %s14, 1
    %p116 = scmp.ne.s32.totalorder %s111, %s113
    %p117 = scmp.eq.s32.totalorder %s14, 0
    %p118 = por %p116, %p117
    %p119 = scmp.ne.s32.totalorder %s111, %s113
    %p120 = scmp.eq.s32.totalorder %s19, 1
    %p121 = por %p119, %p120
    %p122 = scmp.ne.s32.totalorder %s113, %s114
    %p123 = scmp.eq.s32.totalorder %s19, 0
    %p124 = por %p122, %p123
    %p125 = scmp.ne.s32.totalorder %s113, %s114
    %p126 = scmp.eq.s32.totalorder %s20, 1
    %p127 = por %p125, %p126
    %p129 = scmp.ne.s32.totalorder %s114, %s128
    %p130 = scmp.eq.s32.totalorder %s20, 0
    %p131 = por %p129, %p130
    %s133 = sadd.s32 %s132, 1
    %p136 = scmp.eq.s32.totalorder %s14, 1
    %p137 = scmp.ne.s32.totalorder %s132, %s134
    %p138 = scmp.eq.s32.totalorder %s14, 0
    %p139 = por %p137, %p138
    %p140 = scmp.ne.s32.totalorder %s132, %s134
    %p141 = scmp.eq.s32.totalorder %s19, 1
    %p142 = por %p140, %p141
    %p143 = scmp.ne.s32.totalorder %s134, %s135
    %p144 = scmp.eq.s32.totalorder %s19, 0
    %p145 = por %p143, %p144
    %p146 = scmp.ne.s32.totalorder %s134, %s135
    %p147 = scmp.eq.s32.totalorder %s20, 1
    %p148 = por %p146, %p147
    %p150 = scmp.ne.s32.totalorder %s135, %s149
    %p151 = scmp.eq.s32.totalorder %s20, 0
    %p152 = por %p150, %p151
    %s154 = sadd.s32 %s153, 1
    %p157 = scmp.eq.s32.totalorder %s14, 1
    %p158 = scmp.ne.s32.totalorder %s153, %s155
    %p159 = scmp.eq.s32.totalorder %s14, 0
    %p160 = por %p158, %p159
    %p161 = scmp.ne.s32.totalorder %s153, %s155
    %p162 = scmp.eq.s32.totalorder %s19, 1
    %p163 = por %p161, %p162
    %p164 = scmp.ne.s32.totalorder %s155, %s156
    %p165 = scmp.eq.s32.totalorder %s19, 0
    %p166 = por %p164, %p165
    %p167 = scmp.ne.s32.totalorder %s155, %s156
    %p168 = scmp.eq.s32.totalorder %s20, 1
    %p169 = por %p167, %p168
    %p171 = scmp.ne.s32.totalorder %s156, %s170
    %p172 = scmp.eq.s32.totalorder %s20, 0
    %p173 = por %p171, %p172
    %s175 = sadd.s32 %s174, 1
    %p178 = scmp.eq.s32.totalorder %s14, 1
    %p179 = scmp.ne.s32.totalorder %s174, %s176
    %p180 = scmp.eq.s32.totalorder %s14, 0
    %p181 = por %p179, %p180
    %p182 = scmp.ne.s32.totalorder %s174, %s176
    %p183 = scmp.eq.s32.totalorder %s19, 1
    %p184 = por %p182, %p183
    %p185 = scmp.ne.s32.totalorder %s176, %s177
    %p186 = scmp.eq.s32.totalorder %s19, 0
    %p187 = por %p185, %p186
    %p188 = scmp.ne.s32.totalorder %s176, %s177
    %p189 = scmp.eq.s32.totalorder %s20, 1
    %p190 = por %p188, %p189
    %p192 = scmp.ne.s32.totalorder %s177, %s191
    %p193 = scmp.eq.s32.totalorder %s20, 0
    %p194 = por %p192, %p193
    %s195 = ssub.s32 %s14, %s21
    %p196 = scmp.eq.s32.totalorder %s195, 0
    %s198 = sadd.s32 %s197, 1
    %s199 = scalar_select %p196, %s197, %s198
    %p202 = pneg %p196
    %p203 = scmp.eq.s32.totalorder %s14, 1
    %p204 = por %p202, %p203
    %p205 = scmp.ne.s32.totalorder %s197, %s200
    %p206 = scmp.eq.s32.totalorder %s14, 0
    %p207 = por %p205, %p206
    %p208 = scmp.ne.s32.totalorder %s197, %s200
    %p209 = scmp.eq.s32.totalorder %s19, 1
    %p210 = por %p208, %p209
    %p211 = scmp.ne.s32.totalorder %s200, %s201
    %p212 = scmp.eq.s32.totalorder %s19, 0
    %p213 = por %p211, %p212
    %p214 = scmp.ne.s32.totalorder %s200, %s201
    %p215 = scmp.eq.s32.totalorder %s20, 1
    %p216 = por %p214, %p215
    %p218 = scmp.ne.s32.totalorder %s201, %s217
    %p219 = scmp.eq.s32.totalorder %s20, 0
    %p220 = por %p218, %p219
    %p221 = scmp.le.s32.totalorder 1, %s14
    %p222 = scmp.lt.s32.totalorder %s14, 3
    %p223 = pnand %p221, %p222
    %p224 = pneg %p223
    // Predicated region
    $region9: #{simple_net_forward.1} parent=5 // pred_check
      _
    $region10: #{simple_net_forward.1} parent=5 // pred_check_branch
      %226 = sbr.rel (%p223) target = $region12
    $region11: #{simple_net_forward.1} parent=5 // pred_region
      %s227 = ssub.s32 %s14, 1
      // Predicated region
      $region13: #{simple_net_forward.1} parent=11 // pred_check
        %p228 = pneg %p61
      $region14: #{simple_net_forward.1} parent=11 // pred_check_branch
        %230 = sbr.rel (%p228) target = $region16
      $region15: #{simple_net_forward.1} parent=11 // pred_region
        _
      $region16: #{simple_net_forward.1} parent=11 // pred_fallthru
        _
      // Predicated region
      $region17: #{simple_net_forward.1} parent=11 // pred_check
        %p231 = pneg %p82
      $region18: #{simple_net_forward.1} parent=11 // pred_check_branch
        %233 = sbr.rel (%p231) target = $region20
      $region19: #{simple_net_forward.1} parent=11 // pred_region
        _
      $region20: #{simple_net_forward.1} parent=11 // pred_fallthru
        _
      // Predicated region
      $region21: #{simple_net_forward.1} parent=11 // pred_check
        %p234 = pneg %p103
      $region22: #{simple_net_forward.1} parent=11 // pred_check_branch
        %236 = sbr.rel (%p234) target = $region24
      $region23: #{simple_net_forward.1} parent=11 // pred_region
        _
      $region24: #{simple_net_forward.1} parent=11 // pred_fallthru
        _
      // Predicated region
      $region25: #{simple_net_forward.1} parent=11 // pred_check
        %p237 = pneg %p124
      $region26: #{simple_net_forward.1} parent=11 // pred_check_branch
        %239 = sbr.rel (%p237) target = $region28
      $region27: #{simple_net_forward.1} parent=11 // pred_region
        _
      $region28: #{simple_net_forward.1} parent=11 // pred_fallthru
        _
      // Predicated region
      $region29: #{simple_net_forward.1} parent=11 // pred_check
        %p240 = pneg %p145
      $region30: #{simple_net_forward.1} parent=11 // pred_check_branch
        %242 = sbr.rel (%p240) target = $region32
      $region31: #{simple_net_forward.1} parent=11 // pred_region
        _
      $region32: #{simple_net_forward.1} parent=11 // pred_fallthru
        _
      // Predicated region
      $region33: #{simple_net_forward.1} parent=11 // pred_check
        %p243 = pneg %p166
      $region34: #{simple_net_forward.1} parent=11 // pred_check_branch
        %245 = sbr.rel (%p243) target = $region36
      $region35: #{simple_net_forward.1} parent=11 // pred_region
        _
      $region36: #{simple_net_forward.1} parent=11 // pred_fallthru
        _
      // Predicated region
      $region37: #{simple_net_forward.1} parent=11 // pred_check
        %p246 = pneg %p187
      $region38: #{simple_net_forward.1} parent=11 // pred_check_branch
        %248 = sbr.rel (%p246) target = $region40
      $region39: #{simple_net_forward.1} parent=11 // pred_region
        _
      $region40: #{simple_net_forward.1} parent=11 // pred_fallthru
        _
    $region12: #{simple_net_forward.1} parent=5 // pred_fallthru
      _
    %p249 = scmp.lt.s32.totalorder %s14, 2
    // Predicated region
    $region41: #{simple_net_forward.1} parent=5 // pred_check
      %p250 = pneg %p249
    $region42: #{simple_net_forward.1} parent=5 // pred_check_branch
      %252 = sbr.rel (%p250) target = $region44
    $region43: #{simple_net_forward.1} parent=5 // pred_region
      // Predicated region
      $region45: #{simple_net_forward.1} parent=43 // pred_check
        %p253 = pneg %p34
      $region46: #{simple_net_forward.1} parent=43 // pred_check_branch
        %255 = sbr.rel (%p253) target = $region48
      $region47: #{simple_net_forward.1} parent=43 // pred_region
        %p256 = scmp.lt.s32.totalorder %s14, 1
        %s257 = scalar_select %p256, %s14, 1
        %s258 = smul.addr %s257, 4
        %s259 = smul.addr %s258, 4
        %s260 = scalar_lea.vmem %s0, %s259
      $region48: #{simple_net_forward.1} parent=43 // pred_fallthru
        _
    $region44: #{simple_net_forward.1} parent=5 // pred_fallthru
      _
    %p261 = scmp.le.s32.totalorder 1, %s14
    %p262 = scmp.lt.s32.totalorder %s14, 3
    %p263 = pnand %p261, %p262
    %p264 = pneg %p263
    // Predicated region
    $region49: #{simple_net_forward.1} parent=5 // pred_check
      _
    $region50: #{simple_net_forward.1} parent=5 // pred_check_branch
      %266 = sbr.rel (%p263) target = $region52
    $region51: #{simple_net_forward.1} parent=5 // pred_region
      %s267 = ssub.s32 %s14, 1
      %p268 = scmp.lt.s32.totalorder %s19, 1
      %s269 = scalar_select %p268, %s19, 1
      %s270 = smul.addr %s269, 4
      %s271 = smul.addr %s270, 4
      %s272 = scalar_lea.vmem %s0, %s271
      %p273 = pneg %p40
      %p274 = pneg %p37
      %p275 = pneg %p61
      %p276 = pneg %p58
      %p277 = pneg %p82
      %p278 = pneg %p79
      %p279 = pneg %p103
      %p280 = pneg %p100
      %p281 = pneg %p124
      %p282 = pneg %p121
      %p283 = pneg %p145
      %p284 = pneg %p142
      %p285 = pneg %p166
      %p286 = pneg %p163
      %p287 = pneg %p187
      %p288 = pneg %p184
      %p289 = pneg %p213
      %p290 = pneg %p210
      %p291 = scmp.lt.s32.totalorder %s19, 1
      %s292 = scalar_select %p291, %s19, 1
      %s293 = smul.addr %s292, 6
      %s294 = smul.addr %s293, 8
      %s295 = scalar_lea.vmem %s8, %s294
      %p296 = scmp.lt.s32.totalorder %s19, 1
      %s297 = scalar_select %p296, %s19, 1
      %s298 = smul.addr %s297, 4
      %s299 = smul.addr %s298, 4
      %s300 = scalar_lea.vmem %s0, %s299
      %p301 = scmp.lt.s32.totalorder %s19, 1
      %s302 = scalar_select %p301, %s19, 1
      %s303 = smul.addr %s302, 6
      %s304 = smul.addr %s303, 8
      %s305 = scalar_lea.vmem %s8, %s304
      %v307 = vld [vmem:[%s1] sm:$0xf]
      %v308 = vld [vmem:[%s1 + $0x4] sm:$0x1]
      %v309 = vld [vmem:[%s300] sm:$0xf]
      %v310 = vld [vmem:[%s300 + $0x4] sm:$0xf]
      %v311 = vld [vmem:[%s300 + $0x8] sm:$0xf]
      %v312 = vld [vmem:[%s300 + $0xc] sm:$0x3]
      %v313 = vld [vmem:[%s2] sm:$0xff]
      %v314 = vld [vmem:[%s2 + $0x8] sm:$0x3]
      %316 = vset.pattern.permute.xlu0 0
      %317 = vperm.xlu0 %316, %v313
      %v318 = vpop.permute.xlu0 %317
      %321 = vset.pattern.permute.xlu0 0
      %322 = vperm.xlu0 %321, %v314
      %v323 = vpop.permute.xlu0 %322
      %v327 = vunpack.c.l.b16 %v307
      %v328 = vunpack.c.l.b16 %v308
      %v329 = vpack.c.b16 %v328, %v327
      %v334 = vunpack.c.l.b16 %v309
      %v335 = vunpack.c.l.b16 %v310
      %v336 = vunpack.c.l.b16 %v311
      %v337 = vunpack.c.l.b16 %v312
      %v338 = vpack.c.b16 %v335, %v334
      %v339 = vpack.c.b16 %v337, %v336
      %vm341 = vcmask 220160
      %v343 = vsel %vm341, %v329, 0
      %vm345 = vcmask 1044480
      %vm346 = vcmask 1045504
      %v347 = vsel %vm345, 4294967295, 65535
      %v348 = vsel %vm346, %v347, 0
      %v350 = vand.u32 %v339, %v348
      %352 = vmatprep.subr.bf16.mxu0 0
      %353 = vmatpush1.bf16.msra.mxu0 %v338
      %354 = vmatprep.subr.bf16.mxu0 0
      %355 = vmatpush1.bf16.msra.mxu0 %v350
      %356 = vmatprep.subr.bf16.mxu0 0
      %357 = vmatpush1.bf16.msra.mxu0 0
      %358 = vmatprep.subr.bf16.mxu0 0
      %359 = vmatpush1.bf16.msra.mxu0 0
      %360 = vmatprep.subr.bf16.mxu0 0
      %361 = vmatpush1.bf16.msra.mxu0 0
      %362 = vmatprep.subr.bf16.mxu0 0
      %363 = vmatpush1.bf16.msra.mxu0 0
      %364 = vmatprep.subr.bf16.mxu0 0
      %365 = vmatpush1.bf16.msra.mxu0 0
      %366 = vmatprep.subr.bf16.mxu0 0
      %367 = vmatpush1.bf16.msra.mxu0 0
      %368 = vmatprep.subr.bf16.mxu0 0
      %369 = vmatpush1.bf16.msra.mxu0 0
      %370 = vmatprep.subr.bf16.mxu0 0
      %371 = vmatpush1.bf16.msra.mxu0 0
      %372 = vmatprep.subr.bf16.mxu0 0
      %373 = vmatpush1.bf16.msra.mxu0 0
      %374 = vmatprep.subr.bf16.mxu0 0
      %375 = vmatpush1.bf16.msra.mxu0 0
      %376 = vmatprep.subr.bf16.mxu0 0
      %377 = vmatpush1.bf16.msra.mxu0 0
      %378 = vmatprep.subr.bf16.mxu0 0
      %379 = vmatpush1.bf16.msra.mxu0 0
      %380 = vmatprep.subr.bf16.mxu0 0
      %381 = vmatpush1.bf16.msra.mxu0 0
      %382 = vmatprep.subr.bf16.mxu0 0
      %383 = vmatpush1.bf16.msra.mxu0 0
      %384 = vmatprep.mubr.bf16.mxu0 0
      %385 = vmatmul.mubr.bf16.gmra.mrb[0].mxu0 %v343
      %v386 = vpop.f32.mrb[0].mxu0
      %v387 = vadd.f32 %v318, %v386
      %v388 = vpop.f32.mrb[0].mxu0
      %v389 = vpop.f32.mrb[0].mxu0
      %v390 = vadd.f32 %v323, %v389
      %v391 = vpop.f32.mrb[0].mxu0
      %392 = vdwg.mxu0
      %vm393 = vcmask 785408
      %394 = vst.msk [vmem:[#allocation2] sm:$0xff] %vm393, 0.0
      %vm395 = vcmask 779264
      %396 = vst.msk [vmem:[#allocation2 + $0x8] sm:$0x3] %vm395, 0.0
      %vm397 = vcmask 523264
      %398 = vst.msk [vmem:[#allocation4] sm:$0xff] %vm397, 0
      %399 = vst.msk [vmem:[#allocation4 + $0x8] sm:$0xff] %vm397, 0
      %400 = vst.msk [vmem:[#allocation4 + $0x10] sm:$0xff] %vm397, 0
      %401 = vst.msk [vmem:[#allocation4 + $0x18] sm:$0xff] %vm397, 0
      %402 = vst.msk [vmem:[#allocation4 + $0x20] sm:$0xff] %vm397, 0
      %403 = vst.msk [vmem:[#allocation4 + $0x28] sm:$0xff] %vm397, 0
      %404 = vst.msk [vmem:[#allocation4 + $0x30] sm:$0xff] %vm397, 0
      %405 = vst.msk [vmem:[#allocation4 + $0x38] sm:$0xff] %vm397, 0
      %406 = vst.msk [vmem:[#allocation4 + $0x40] sm:$0xff] %vm397, 0
      %409 = vrot.lane.b32.xlu0 %v387, 16
      %v410 = vpop.permute.xlu0 %409
      %411 = vrot.lane.b32.xlu0 %v390, 16
      %v412 = vpop.permute.xlu0 %411
      %vm415 = vcmask 654464
      %416 = vst.msk [vmem:[#allocation2] sm:$0xff] %vm415, %v410
      %vm417 = vcmask 648320
      %418 = vst.msk [vmem:[#allocation2 + $0x8] sm:$0x3] %vm417, %v412
      %v419 = vld [vmem:[#allocation2] sm:$0xff]
      %v420 = vld [vmem:[#allocation2 + $0x8] sm:$0x3]
      %v421 = vld [vmem:[%s5] sm:$0x1]
      %v423 = vlaneseq
      %v424 = vshrl.u32 %v423, 7
      %v425 = vsub.s32 0, %v424
      %v426 = vrot.slane %v421, %v425
      %427 = vrot.lane.b32.xlu0 %v426, 7
      %v428 = vpop.permute.xlu0 %427
      %v430 = vmul.f32 %v419, %v428
      %v431 = vmul.f32 %v420, %v428
      %v432 = vpack.c.bf16 %v431, %v430
      %434 = vrot.lane.b32.xlu0 %v432, 121
      %v435 = vpop.permute.xlu0 %434
      %vm437 = vcmask 520192
      %438 = vst.msk [vmem:[#allocation4] sm:$0x1f] %vm437, %v435
      %s439 = scalar_lea.vmem %s5, 1
      %v440 = vld [vmem:[%s439] sm:$0x1]
      %v442 = vlaneseq
      %v443 = vshrl.u32 %v442, 7
      %v444 = vsub.s32 0, %v443
      %v445 = vrot.slane %v440, %v444
      %446 = vrot.lane.b32.xlu0 %v445, 8
      %v447 = vpop.permute.xlu0 %446
      %v449 = vmul.f32 %v419, %v447
      %v450 = vmul.f32 %v420, %v447
      %v451 = vpack.c.bf16 %v450, %v449
      %453 = vrot.lane.b32.xlu0 %v451, 120
      %v454 = vpop.permute.xlu0 %453
      %456 = vst.msk [vmem:[#allocation4 + $0x8] sm:$0x1f] %vm437, %v454
      %s457 = scalar_lea.vmem %s5, 2
      %v458 = vld [vmem:[%s457] sm:$0x1]
      %v460 = vlaneseq
      %v461 = vshrl.u32 %v460, 7
      %v462 = vsub.s32 0, %v461
      %v463 = vrot.slane %v458, %v462
      %464 = vrot.lane.b32.xlu0 %v463, 9
      %v465 = vpop.permute.xlu0 %464
      %v467 = vmul.f32 %v419, %v465
      %v468 = vmul.f32 %v420, %v465
      %v469 = vpack.c.bf16 %v468, %v467
      %471 = vrot.lane.b32.xlu0 %v469, 119
      %v472 = vpop.permute.xlu0 %471
      %474 = vst.msk [vmem:[#allocation4 + $0x10] sm:$0x1f] %vm437, %v472
      %s475 = scalar_lea.vmem %s5, 3
      %v476 = vld [vmem:[%s475] sm:$0x1]
      %v478 = vlaneseq
      %v479 = vshrl.u32 %v478, 7
      %v480 = vsub.s32 0, %v479
      %v481 = vrot.slane %v476, %v480
      %482 = vrot.lane.b32.xlu0 %v481, 15
      %v483 = vpop.permute.xlu0 %482
      %v485 = vmul.f32 %v419, %v483
      %v486 = vmul.f32 %v420, %v483
      %v487 = vpack.c.bf16 %v486, %v485
      %489 = vrot.lane.b32.xlu0 %v487, 113
      %v490 = vpop.permute.xlu0 %489
      %492 = vst.msk [vmem:[#allocation4 + $0x18] sm:$0x1f] %vm437, %v490
      %s493 = scalar_lea.vmem %s5, 4
      %v494 = vld [vmem:[%s493] sm:$0x1]
      %v496 = vlaneseq
      %v497 = vshrl.u32 %v496, 7
      %v498 = vsub.s32 0, %v497
      %v499 = vrot.slane %v494, %v498
      %500 = vrot.lane.b32.xlu0 %v499, 16
      %v501 = vpop.permute.xlu0 %500
      %v503 = vmul.f32 %v419, %v501
      %v504 = vmul.f32 %v420, %v501
      %v505 = vpack.c.bf16 %v504, %v503
      %507 = vrot.lane.b32.xlu0 %v505, 112
      %v508 = vpop.permute.xlu0 %507
      %510 = vst.msk [vmem:[#allocation4 + $0x20] sm:$0x1f] %vm437, %v508
      %s511 = scalar_lea.vmem %s5, 5
      %v512 = vld [vmem:[%s511] sm:$0x1]
      %v514 = vlaneseq
      %v515 = vshrl.u32 %v514, 7
      %v516 = vsub.s32 0, %v515
      %v517 = vrot.slane %v512, %v516
      %518 = vrot.lane.b32.xlu0 %v517, 17
      %v519 = vpop.permute.xlu0 %518
      %v521 = vmul.f32 %v419, %v519
      %v522 = vmul.f32 %v420, %v519
      %v523 = vpack.c.bf16 %v522, %v521
      %525 = vrot.lane.b32.xlu0 %v523, 111
      %v526 = vpop.permute.xlu0 %525
      %528 = vst.msk [vmem:[#allocation4 + $0x28] sm:$0x1f] %vm437, %v526
      %s529 = scalar_lea.vmem %s5, 6
      %v530 = vld [vmem:[%s529] sm:$0x1]
      %v532 = vlaneseq
      %v533 = vshrl.u32 %v532, 7
      %v534 = vsub.s32 0, %v533
      %v535 = vrot.slane %v530, %v534
      %536 = vrot.lane.b32.xlu0 %v535, 23
      %v537 = vpop.permute.xlu0 %536
      %v539 = vmul.f32 %v419, %v537
      %v540 = vmul.f32 %v420, %v537
      %v541 = vpack.c.bf16 %v540, %v539
      %543 = vrot.lane.b32.xlu0 %v541, 105
      %v544 = vpop.permute.xlu0 %543
      %546 = vst.msk [vmem:[#allocation4 + $0x30] sm:$0x1f] %vm437, %v544
      %s547 = scalar_lea.vmem %s5, 7
      %v548 = vld [vmem:[%s547] sm:$0x1]
      %v550 = vlaneseq
      %v551 = vshrl.u32 %v550, 7
      %v552 = vsub.s32 0, %v551
      %v553 = vrot.slane %v548, %v552
      %554 = vrot.lane.b32.xlu0 %v553, 24
      %v555 = vpop.permute.xlu0 %554
      %v557 = vmul.f32 %v419, %v555
      %v558 = vmul.f32 %v420, %v555
      %v559 = vpack.c.bf16 %v558, %v557
      %561 = vrot.lane.b32.xlu0 %v559, 104
      %v562 = vpop.permute.xlu0 %561
      %564 = vst.msk [vmem:[#allocation4 + $0x38] sm:$0x1f] %vm437, %v562
      %s565 = scalar_lea.vmem %s5, 8
      %v566 = vld [vmem:[%s565] sm:$0x1]
      %v568 = vlaneseq
      %v569 = vshrl.u32 %v568, 7
      %v570 = vsub.s32 0, %v569
      %v571 = vrot.slane %v566, %v570
      %572 = vrot.lane.b32.xlu0 %v571, 25
      %v573 = vpop.permute.xlu0 %572
      %v575 = vmul.f32 %v419, %v573
      %v576 = vmul.f32 %v420, %v573
      %v577 = vpack.c.bf16 %v576, %v575
      %579 = vrot.lane.b32.xlu0 %v577, 103
      %v580 = vpop.permute.xlu0 %579
      %582 = vst.msk [vmem:[#allocation4 + $0x40] sm:$0x1f] %vm437, %v580
      %v583 = vld [vmem:[%s3] sm:$0xff]
      %v584 = vld [vmem:[%s3 + $0x8] sm:$0xff]
      %v585 = vld [vmem:[%s3 + $0x10] sm:$0x33]
      %v586 = vld [vmem:[#allocation4] sm:$0xff]
      %v587 = vld [vmem:[#allocation4 + $0x8] sm:$0xff]
      %v588 = vld [vmem:[#allocation4 + $0x10] sm:$0xff]
      %v589 = vld [vmem:[#allocation4 + $0x18] sm:$0xff]
      %v590 = vld [vmem:[#allocation4 + $0x20] sm:$0xff]
      %v591 = vld [vmem:[#allocation4 + $0x28] sm:$0xff]
      %v592 = vld [vmem:[#allocation4 + $0x30] sm:$0xff]
      %v593 = vld [vmem:[#allocation4 + $0x38] sm:$0xff]
      %v594 = vld [vmem:[#allocation4 + $0x40] sm:$0xff]
      %v595 = vld [vmem:[%s4] sm:$0xff]
      %v596 = vld [vmem:[%s4 + $0x8] sm:$0xff]
      %v597 = vld [vmem:[%s4 + $0x10] sm:$0xf]
      %599 = vset.pattern.permute.xlu0 0
      %600 = vperm.xlu0 %599, %v595
      %v601 = vpop.permute.xlu0 %600
      %604 = vset.pattern.permute.xlu0 0
      %605 = vperm.xlu0 %604, %v596
      %v606 = vpop.permute.xlu0 %605
      %609 = vset.pattern.permute.xlu0 0
      %610 = vperm.xlu0 %609, %v597
      %v611 = vpop.permute.xlu0 %610
      %v616 = vunpack.c.l.b16 %v583
      %v617 = vunpack.c.h.b16 %v583
      %v618 = vunpack.c.l.b16 %v584
      %v619 = vunpack.c.h.b16 %v584
      %v620 = vunpack.c.l.b16 %v585
      %v621 = vunpack.c.h.b16 %v585
      %v622 = vpack.c.b16 %v618, %v616
      %v623 = vpack.c.b16 %v619, %v617
      %v624 = vpack.c.b16 %v620, %v620
      %v625 = vpack.c.b16 %v621, %v621
      %vm628 = vcmask 130048
      %v630 = vsel %vm628, %v623, 0
      %v633 = vsel %vm628, %v625, 0
      %635 = vmatprep.subr.bf16.mxu0 0
      %636 = vmatpush1.bf16.msra.mxu0 %v586
      %637 = vmatprep.subr.bf16.mxu0 0
      %638 = vmatpush1.bf16.msra.mxu0 %v587
      %639 = vmatprep.subr.bf16.mxu0 0
      %640 = vmatpush1.bf16.msra.mxu0 %v588
      %641 = vmatprep.subr.bf16.mxu0 0
      %642 = vmatpush1.bf16.msra.mxu0 %v589
      %643 = vmatprep.subr.bf16.mxu0 0
      %644 = vmatpush1.bf16.msra.mxu0 %v590
      %645 = vmatprep.subr.bf16.mxu0 0
      %646 = vmatpush1.bf16.msra.mxu0 %v591
      %647 = vmatprep.subr.bf16.mxu0 0
      %648 = vmatpush1.bf16.msra.mxu0 %v592
      %649 = vmatprep.subr.bf16.mxu0 0
      %650 = vmatpush1.bf16.msra.mxu0 %v593
      %651 = vmatprep.subr.bf16.mxu0 0
      %652 = vmatpush1.bf16.msra.mxu0 %v594
      %653 = vmatprep.subr.bf16.mxu0 0
      %654 = vmatpush1.bf16.msra.mxu0 0
      %655 = vmatprep.subr.bf16.mxu0 0
      %656 = vmatpush1.bf16.msra.mxu0 0
      %657 = vmatprep.subr.bf16.mxu0 0
      %658 = vmatpush1.bf16.msra.mxu0 0
      %659 = vmatprep.subr.bf16.mxu0 0
      %660 = vmatpush1.bf16.msra.mxu0 0
      %661 = vmatprep.subr.bf16.mxu0 0
      %662 = vmatpush1.bf16.msra.mxu0 0
      %663 = vmatprep.subr.bf16.mxu0 0
      %664 = vmatpush1.bf16.msra.mxu0 0
      %665 = vmatprep.subr.bf16.mxu0 0
      %666 = vmatpush1.bf16.msra.mxu0 0
      %667 = vmatprep.mubr.bf16.mxu0 %v630
      %668 = vmatmul.mubr.bf16.gmra.mrb[0].mxu0 %v622
      %v669 = vpop.f32.mrb[0].mxu0
      %v670 = vadd.f32 %v601, %v669
      %v671 = vpop.f32.mrb[0].mxu0
      %v672 = vpop.f32.mrb[0].mxu0
      %v673 = vadd.f32 %v606, %v672
      %v674 = vpop.f32.mrb[0].mxu0
      %675 = vmatprep.mubr.bf16.mxu0 %v633
      %676 = vmatmul.mubr.bf16.gmra.mrb[0].mxu0 %v624
      %v677 = vpop.f32.mrb[0].mxu0
      %v678 = vadd.f32 %v611, %v677
      %v679 = vpop.f32.mrb[0].mxu0
      %v680 = vpop.f32.mrb[0].mxu0
      %v681 = vpop.f32.mrb[0].mxu0
      %682 = vdwg.mxu0
      %683 = vst.msk [vmem:[#allocation3] sm:$0xff] %vm393, 0.0
      %684 = vst.msk [vmem:[#allocation3 + $0x8] sm:$0xff] %vm393, 0.0
      %vm685 = vcmask 781312
      %686 = vst.msk [vmem:[#allocation3 + $0x10] sm:$0xf] %vm685, 0.0
      %690 = vrot.lane.b32.xlu0 %v670, 16
      %v691 = vpop.permute.xlu0 %690
      %692 = vrot.lane.b32.xlu0 %v673, 16
      %v693 = vpop.permute.xlu0 %692
      %694 = vrot.lane.b32.xlu0 %v678, 16
      %v695 = vpop.permute.xlu0 %694
      %699 = vst.msk [vmem:[#allocation3] sm:$0xff] %vm415, %v691
      %700 = vst.msk [vmem:[#allocation3 + $0x8] sm:$0xff] %vm415, %v693
      %vm701 = vcmask 650368
      %702 = vst.msk [vmem:[#allocation3 + $0x10] sm:$0xf] %vm701, %v695
      %v703 = vld [vmem:[#allocation3] sm:$0xff]
      %v704 = vld [vmem:[#allocation3 + $0x8] sm:$0xff]
      %v705 = vld [vmem:[#allocation3 + $0x10] sm:$0xf]
      %v706 = vld [vmem:[%s6] sm:$0x1]
      %v708 = vlaneseq
      %v709 = vshrl.u32 %v708, 7
      %v710 = vsub.s32 0, %v709
      %v711 = vrot.slane %v706, %v710
      %712 = vrot.lane.b32.xlu0 %v711, 7
      %v713 = vpop.permute.xlu0 %712
      %v715 = vadd.f32 %v703, %v713
      %v716 = vadd.f32 %v704, %v713
      %v717 = vadd.f32 %v705, %v713
      %s718 = scalar_lea.vmem %s6, 1
      %v719 = vld [vmem:[%s718] sm:$0x1]
      %v721 = vlaneseq
      %v722 = vshrl.u32 %v721, 7
      %v723 = vsub.s32 0, %v722
      %v724 = vrot.slane %v719, %v723
      %725 = vrot.lane.b32.xlu0 %v724, 8
      %v726 = vpop.permute.xlu0 %725
      %v728 = vadd.f32 %v703, %v726
      %v729 = vadd.f32 %v704, %v726
      %v730 = vadd.f32 %v705, %v726
      %734 = vrot.lane.b32.xlu0 %v728, 127
      %v735 = vpop.permute.xlu0 %734
      %736 = vrot.lane.b32.xlu0 %v729, 127
      %v737 = vpop.permute.xlu0 %736
      %738 = vrot.lane.b32.xlu0 %v730, 127
      %v739 = vpop.permute.xlu0 %738
      %v743 = vmax.f32 %v715, %v735
      %v744 = vmax.f32 %v716, %v737
      %v745 = vmax.f32 %v717, %v739
      %s746 = scalar_lea.vmem %s6, 2
      %v747 = vld [vmem:[%s746] sm:$0x1]
      %v749 = vlaneseq
      %v750 = vshrl.u32 %v749, 7
      %v751 = vsub.s32 0, %v750
      %v752 = vrot.slane %v747, %v751
      %753 = vrot.lane.b32.xlu0 %v752, 9
      %v754 = vpop.permute.xlu0 %753
      %v756 = vadd.f32 %v703, %v754
      %v757 = vadd.f32 %v704, %v754
      %v758 = vadd.f32 %v705, %v754
      %762 = vrot.lane.b32.xlu0 %v756, 126
      %v763 = vpop.permute.xlu0 %762
      %764 = vrot.lane.b32.xlu0 %v757, 126
      %v765 = vpop.permute.xlu0 %764
      %766 = vrot.lane.b32.xlu0 %v758, 126
      %v767 = vpop.permute.xlu0 %766
      %v771 = vmax.f32 %v743, %v763
      %v772 = vmax.f32 %v744, %v765
      %v773 = vmax.f32 %v745, %v767
      %s774 = scalar_lea.vmem %s6, 3
      %v775 = vld [vmem:[%s774] sm:$0x1]
      %v777 = vlaneseq
      %v778 = vshrl.u32 %v777, 7
      %v779 = vsub.s32 0, %v778
      %v780 = vrot.slane %v775, %v779
      %781 = vrot.lane.b32.xlu0 %v780, 15
      %v782 = vpop.permute.xlu0 %781
      %v784 = vadd.f32 %v703, %v782
      %v785 = vadd.f32 %v704, %v782
      %v786 = vadd.f32 %v705, %v782
      %790 = vrot.lane.b32.xlu0 %v784, 120
      %v791 = vpop.permute.xlu0 %790
      %792 = vrot.lane.b32.xlu0 %v785, 120
      %v793 = vpop.permute.xlu0 %792
      %794 = vrot.lane.b32.xlu0 %v786, 120
      %v795 = vpop.permute.xlu0 %794
      %v799 = vmax.f32 %v771, %v791
      %v800 = vmax.f32 %v772, %v793
      %v801 = vmax.f32 %v773, %v795
      %s802 = scalar_lea.vmem %s6, 4
      %v803 = vld [vmem:[%s802] sm:$0x1]
      %v805 = vlaneseq
      %v806 = vshrl.u32 %v805, 7
      %v807 = vsub.s32 0, %v806
      %v808 = vrot.slane %v803, %v807
      %809 = vrot.lane.b32.xlu0 %v808, 16
      %v810 = vpop.permute.xlu0 %809
      %v812 = vadd.f32 %v703, %v810
      %v813 = vadd.f32 %v704, %v810
      %v814 = vadd.f32 %v705, %v810
      %818 = vrot.lane.b32.xlu0 %v812, 119
      %v819 = vpop.permute.xlu0 %818
      %820 = vrot.lane.b32.xlu0 %v813, 119
      %v821 = vpop.permute.xlu0 %820
      %822 = vrot.lane.b32.xlu0 %v814, 119
      %v823 = vpop.permute.xlu0 %822
      %v827 = vmax.f32 %v799, %v819
      %v828 = vmax.f32 %v800, %v821
      %v829 = vmax.f32 %v801, %v823
      %s830 = scalar_lea.vmem %s6, 5
      %v831 = vld [vmem:[%s830] sm:$0x1]
      %v833 = vlaneseq
      %v834 = vshrl.u32 %v833, 7
      %v835 = vsub.s32 0, %v834
      %v836 = vrot.slane %v831, %v835
      %837 = vrot.lane.b32.xlu0 %v836, 17
      %v838 = vpop.permute.xlu0 %837
      %v840 = vadd.f32 %v703, %v838
      %v841 = vadd.f32 %v704, %v838
      %v842 = vadd.f32 %v705, %v838
      %846 = vrot.lane.b32.xlu0 %v840, 118
      %v847 = vpop.permute.xlu0 %846
      %848 = vrot.lane.b32.xlu0 %v841, 118
      %v849 = vpop.permute.xlu0 %848
      %850 = vrot.lane.b32.xlu0 %v842, 118
      %v851 = vpop.permute.xlu0 %850
      %v855 = vmax.f32 %v827, %v847
      %v856 = vmax.f32 %v828, %v849
      %v857 = vmax.f32 %v829, %v851
      %s858 = scalar_lea.vmem %s6, 6
      %v859 = vld [vmem:[%s858] sm:$0x1]
      %v861 = vlaneseq
      %v862 = vshrl.u32 %v861, 7
      %v863 = vsub.s32 0, %v862
      %v864 = vrot.slane %v859, %v863
      %865 = vrot.lane.b32.xlu0 %v864, 23
      %v866 = vpop.permute.xlu0 %865
      %v868 = vadd.f32 %v703, %v866
      %v869 = vadd.f32 %v704, %v866
      %v870 = vadd.f32 %v705, %v866
      %874 = vrot.lane.b32.xlu0 %v868, 112
      %v875 = vpop.permute.xlu0 %874
      %876 = vrot.lane.b32.xlu0 %v869, 112
      %v877 = vpop.permute.xlu0 %876
      %878 = vrot.lane.b32.xlu0 %v870, 112
      %v879 = vpop.permute.xlu0 %878
      %v883 = vmax.f32 %v855, %v875
      %v884 = vmax.f32 %v856, %v877
      %v885 = vmax.f32 %v857, %v879
      %s886 = scalar_lea.vmem %s6, 7
      %v887 = vld [vmem:[%s886] sm:$0x1]
      %v889 = vlaneseq
      %v890 = vshrl.u32 %v889, 7
      %v891 = vsub.s32 0, %v890
      %v892 = vrot.slane %v887, %v891
      %893 = vrot.lane.b32.xlu0 %v892, 24
      %v894 = vpop.permute.xlu0 %893
      %v896 = vadd.f32 %v703, %v894
      %v897 = vadd.f32 %v704, %v894
      %v898 = vadd.f32 %v705, %v894
      %902 = vrot.lane.b32.xlu0 %v896, 111
      %v903 = vpop.permute.xlu0 %902
      %904 = vrot.lane.b32.xlu0 %v897, 111
      %v905 = vpop.permute.xlu0 %904
      %906 = vrot.lane.b32.xlu0 %v898, 111
      %v907 = vpop.permute.xlu0 %906
      %v911 = vmax.f32 %v883, %v903
      %v912 = vmax.f32 %v884, %v905
      %v913 = vmax.f32 %v885, %v907
      %s914 = scalar_lea.vmem %s6, 8
      %v915 = vld [vmem:[%s914] sm:$0x1]
      %v917 = vlaneseq
      %v918 = vshrl.u32 %v917, 7
      %v919 = vsub.s32 0, %v918
      %v920 = vrot.slane %v915, %v919
      %921 = vrot.lane.b32.xlu0 %v920, 25
      %v922 = vpop.permute.xlu0 %921
      %v924 = vadd.f32 %v703, %v922
      %v925 = vadd.f32 %v704, %v922
      %v926 = vadd.f32 %v705, %v922
      %930 = vrot.lane.b32.xlu0 %v924, 110
      %v931 = vpop.permute.xlu0 %930
      %932 = vrot.lane.b32.xlu0 %v925, 110
      %v933 = vpop.permute.xlu0 %932
      %934 = vrot.lane.b32.xlu0 %v926, 110
      %v935 = vpop.permute.xlu0 %934
      %v939 = vmax.f32 %v911, %v931
      %v940 = vmax.f32 %v912, %v933
      %v941 = vmax.f32 %v913, %v935
      %v942 = vpack.c.bf16 %v940, %v939
      %v943 = vpack.c.bf16 %v941, %v941
      %v944 = vld [vmem:[%s7] sm:$0xff]
      %v945 = vld [vmem:[%s7 + $0x8] sm:$0xff]
      %v946 = vld [vmem:[%s7 + $0x10] sm:$0xff]
      %v947 = vld [vmem:[%s7 + $0x18] sm:$0xff]
      %v948 = vld [vmem:[%s7 + $0x20] sm:$0xff]
      %v949 = vld [vmem:[%s7 + $0x28] sm:$0xff]
      %v950 = vld [vmem:[%s7 + $0x30] sm:$0xff]
      %v951 = vld [vmem:[%s7 + $0x38] sm:$0xff]
      %954 = vrot.lane.b32.xlu0 %v942, 121
      %v955 = vpop.permute.xlu0 %954
      %956 = vrot.lane.b32.xlu0 %v943, 121
      %v957 = vpop.permute.xlu0 %956
      %v966 = vunpack.c.l.b16 %v944
      %v967 = vunpack.c.h.b16 %v944
      %v968 = vunpack.c.l.b16 %v945
      %v969 = vunpack.c.h.b16 %v945
      %v970 = vunpack.c.l.b16 %v946
      %v971 = vunpack.c.h.b16 %v946
      %v972 = vunpack.c.l.b16 %v947
      %v973 = vunpack.c.h.b16 %v947
      %v974 = vunpack.c.l.b16 %v948
      %v975 = vunpack.c.h.b16 %v948
      %v976 = vunpack.c.l.b16 %v949
      %v977 = vunpack.c.h.b16 %v949
      %v978 = vunpack.c.l.b16 %v950
      %v979 = vunpack.c.h.b16 %v950
      %v980 = vunpack.c.l.b16 %v951
      %v981 = vunpack.c.h.b16 %v951
      %v982 = vpack.c.b16 %v968, %v966
      %v983 = vpack.c.b16 %v969, %v967
      %v984 = vpack.c.b16 %v972, %v970
      %v985 = vpack.c.b16 %v973, %v971
      %v986 = vpack.c.b16 %v976, %v974
      %v987 = vpack.c.b16 %v977, %v975
      %v988 = vpack.c.b16 %v980, %v978
      %v989 = vpack.c.b16 %v981, %v979
      %v999 = vsel %vm397, %v955, 0
      %v1002 = vsel %vm397, %v957, 0
      %1004 = vmatprep.subr.bf16.mxu0 %v983
      %1005 = vmatpush1.bf16.msra.mxu0 %v982
      %1006 = vmatprep.subr.bf16.mxu0 %v985
      %1007 = vmatpush1.bf16.msra.mxu0 %v984
      %1008 = vmatprep.subr.bf16.mxu0 %v987
      %1009 = vmatpush1.bf16.msra.mxu0 %v986
      %1010 = vmatprep.subr.bf16.mxu0 %v989
      %1011 = vmatpush1.bf16.msra.mxu0 %v988
      %1012 = vmatprep.subr.bf16.mxu0 0
      %1013 = vmatpush1.bf16.msra.mxu0 0
      %1014 = vmatprep.subr.bf16.mxu0 0
      %1015 = vmatpush1.bf16.msra.mxu0 0
      %1016 = vmatprep.subr.bf16.mxu0 0
      %1017 = vmatpush1.bf16.msra.mxu0 0
      %1018 = vmatprep.subr.bf16.mxu0 0
      %1019 = vmatpush1.bf16.msra.mxu0 0
      %1020 = vmatprep.subr.bf16.mxu0 0
      %1021 = vmatpush1.bf16.msra.mxu0 0
      %1022 = vmatprep.subr.bf16.mxu0 0
      %1023 = vmatpush1.bf16.msra.mxu0 0
      %1024 = vmatprep.subr.bf16.mxu0 0
      %1025 = vmatpush1.bf16.msra.mxu0 0
      %1026 = vmatprep.subr.bf16.mxu0 0
      %1027 = vmatpush1.bf16.msra.mxu0 0
      %1028 = vmatprep.subr.bf16.mxu0 0
      %1029 = vmatpush1.bf16.msra.mxu0 0
      %1030 = vmatprep.subr.bf16.mxu0 0
      %1031 = vmatpush1.bf16.msra.mxu0 0
      %1032 = vmatprep.subr.bf16.mxu0 0
      %1033 = vmatpush1.bf16.msra.mxu0 0
      %1034 = vmatprep.subr.bf16.mxu0 0
      %1035 = vmatpush1.bf16.msra.mxu0 0
      %1036 = vmatprep.mubr.bf16.mxu0 0
      %1037 = vmatmul.mubr.bf16.gmra.mrb[0].mxu0 %v999
      %v1038 = vpop.f32.mrb[0].mxu0
      %v1039 = vadd.f32 0.0, %v1038
      %v1040 = vpop.f32.mrb[0].mxu0
      %v1041 = vadd.f32 0.0, %v1040
      %v1042 = vpop.f32.mrb[0].mxu0
      %v1043 = vadd.f32 0.0, %v1042
      %v1044 = vpop.f32.mrb[0].mxu0
      %v1045 = vadd.f32 0.0, %v1044
      %1046 = vmatprep.mubr.bf16.mxu0 0
      %1047 = vmatmul.mubr.bf16.gmra.mrb[0].mxu0 %v1002
      %v1048 = vpop.f32.mrb[0].mxu0
      %v1049 = vadd.f32 0.0, %v1048
      %v1050 = vpop.f32.mrb[0].mxu0
      %v1051 = vadd.f32 0.0, %v1050
      %v1052 = vpop.f32.mrb[0].mxu0
      %v1053 = vpop.f32.mrb[0].mxu0
      %1054 = vdwg.mxu0
      %1055 = vst [vmem:[%s305] sm:$0xff] %v1039
      %1056 = vst [vmem:[%s305 + $0x8] sm:$0xff] %v1041
      %1057 = vst [vmem:[%s305 + $0x10] sm:$0xff] %v1043
      %1058 = vst [vmem:[%s305 + $0x18] sm:$0xff] %v1045
      %1059 = vst [vmem:[%s305 + $0x20] sm:$0xf] %v1049
      %1060 = vst [vmem:[%s305 + $0x28] sm:$0xf] %v1051
      %p1061 = scmp.lt.s32.totalorder %s19, 1
      %s1062 = scalar_select %p1061, %s19, 1
      %s1063 = smul.addr %s1062, 6
      %s1064 = smul.addr %s1063, 8
      %s1065 = scalar_lea.vmem %s8, %s1064
      // Predicated region
      $region53: #{simple_net_forward.1} parent=51 // pred_check
        %p1066 = pneg %p210
      $region54: #{simple_net_forward.1} parent=51 // pred_check_branch
        %1068 = sbr.rel (%p1066) target = $region56
      $region55: #{simple_net_forward.1} parent=51 // pred_region
        _
      $region56: #{simple_net_forward.1} parent=51 // pred_fallthru
        _
    $region52: #{simple_net_forward.1} parent=5 // pred_fallthru
      _
    %p1069 = scmp.le.s32.totalorder 2, %s14
    // Predicated region
    $region57: #{simple_net_forward.1} parent=5 // pred_check
      %p1070 = pneg %p1069
    $region58: #{simple_net_forward.1} parent=5 // pred_check_branch
      %1072 = sbr.rel (%p1070) target = $region60
    $region59: #{simple_net_forward.1} parent=5 // pred_region
      %s1073 = ssub.s32 %s14, 2
      // Predicated region
      $region61: #{simple_net_forward.1} parent=59 // pred_check
        %p1074 = pneg %p216
      $region62: #{simple_net_forward.1} parent=59 // pred_check_branch
        %1076 = sbr.rel (%p1074) target = $region64
      $region63: #{simple_net_forward.1} parent=59 // pred_region
        %p1077 = scmp.lt.s32.totalorder %s20, 1
        %s1078 = scalar_select %p1077, %s20, 1
        %s1079 = smul.addr %s1078, 6
        %s1080 = smul.addr %s1079, 8
        %s1081 = scalar_lea.vmem %s8, %s1080
      $region64: #{simple_net_forward.1} parent=59 // pred_fallthru
        _
    $region60: #{simple_net_forward.1} parent=5 // pred_fallthru
      _
  $region6: #{simple_net_forward.1} parent=0 // loop_footer
    %s18 = sadd.s32 1, %s14
  $region7: #{simple_net_forward.1} parent=0 // loop_footer_branch
    %13 = sbr.rel target = $region3
  $region8: #{simple_net_forward.1} parent=0 // loop_exit
    _

</llo_original>
